<compile_context>
chip_gen: v5e
topology: v5e:2x2
jax: 0.10.0
libtpu: 0.0.40
codegen_flags: <defaults>
</compile_context>

<pallas_src>
import functools

import jax
import jax.numpy as jnp
from jax.experimental import pallas as pl
from jax.experimental.pallas import tpu as pltpu

NEG = -1e30      # mask value for the running max / padded logits
ROW = 16         # row granularity (bf16 native sublane tile is (16, 128))
T_SUB = 16       # target rows per running-max strip
S_SUB = 16       # source rows per statically-unrolled chunk
N_PAR = 4        # independent running-max partials (breaks the VALU dep chain)

# pltpu.CompilerParams was called TPUCompilerParams in older JAX releases.
_CompilerParams = getattr(pltpu, "CompilerParams", None)
if _CompilerParams is None:
    _CompilerParams = getattr(pltpu, "TPUCompilerParams")

_reciprocal = getattr(pl, "reciprocal", None)


def _round_up(a, m):
    return ((a + m - 1) // m) * m


# ----------------------------------------------------------------------------
# Kernel 1: one GraphSAGE++ layer (mean-SAGEConv + max-SAGEConv, concat, relu)
# grid = (T tiles [parallel], S tiles [arbitrary/reduction])
# ----------------------------------------------------------------------------
def sage_layer_kernel(adj_ref, x_ref, xt_ref, w_ref, b_ref, out_ref,
                      sum_acc, max_acc, *, ones_col, apply_relu):
    k = pl.program_id(1)
    tt, st = adj_ref.shape

    @pl.when(k == 0)
    def _init():
        sum_acc[...] = jnp.zeros_like(sum_acc)
        max_acc[...] = jnp.full_like(max_acc, NEG)

    # Mean-sum and degree in a single bf16 MXU matmul (f32 accumulation); the
    # ones column folded into x makes column `ones_col` of the sum the degree.
    sum_acc[...] += jnp.dot(adj_ref[...], x_ref[...],
                            preferred_element_type=jnp.float32)

    # Running max: vreg-resident accumulators, no 3-D masked temp, no sublane
    # reduce.  Outer fori over T_SUB-row strips; source loop fully static so
    # loads can co-issue with the VPU add/max work.
    n_t_sub = tt // T_SUB

    def t_body(ti, carry):
        t0 = pl.multiple_of(ti * T_SUB, T_SUB)
        adj_rows = adj_ref[pl.ds(t0, T_SUB), :]                      # (T_SUB, st)
        # Hoisted additive edge mask: 0 where an edge exists, -1e30 otherwise
        # (one cmp+select per adjacency element, not per channel).
        bias = jnp.where(adj_rows > 0, jnp.float32(0.0), jnp.float32(NEG))
        accs = [max_acc[pl.ds(t0, T_SUB), :]]                        # (T_SUB, cin)
        accs += [jnp.full_like(accs[0], NEG) for _ in range(N_PAR - 1)]
        idx = 0
        for s0 in range(0, st, S_SUB):                               # static
            x_chunk = x_ref[s0:s0 + S_SUB, :].astype(jnp.float32)    # (S_SUB, cin)
            for j in range(S_SUB):                                   # static unroll
                cand = x_chunk[j:j + 1, :] + bias[:, s0 + j:s0 + j + 1]
                p = idx % N_PAR
                accs[p] = jnp.maximum(accs[p], cand)
                idx += 1
        acc = accs[0]
        for extra in accs[1:]:
            acc = jnp.maximum(acc, extra)
        max_acc[pl.ds(t0, T_SUB), :] = acc
        return carry

    jax.lax.fori_loop(0, n_t_sub, t_body, 0)

    # Last S tile: finish mean/max, three accumulating SAGEConv matmuls
    # (no concatenate), single lane-dense store.
    @pl.when(k == pl.num_programs(1) - 1)
    def _finalize():
        summed = sum_acc[...]                                        # (tt, cin_pad)
        deg = summed[:, ones_col:ones_col + 1]                       # (tt, 1)
        safe_deg = jnp.maximum(deg, 1.0)
        if _reciprocal is not None:
            inv_deg = _reciprocal(safe_deg, approx=True)             # EUP slot
        else:
            inv_deg = 1.0 / safe_deg
        mean_agg = (summed * inv_deg).astype(jnp.bfloat16)           # empty rows -> 0
        max_agg = jnp.where(deg > 0, max_acc[...], 0.0).astype(jnp.bfloat16)
        h = (jnp.dot(mean_agg, w_ref[0], preferred_element_type=jnp.float32)
             + jnp.dot(max_agg, w_ref[1], preferred_element_type=jnp.float32)
             + jnp.dot(xt_ref[...], w_ref[2], preferred_element_type=jnp.float32)
             + b_ref[...])
        if apply_relu:
            h = jnp.maximum(h, 0.0)
        out_ref[...] = h


def sage_layer(x_real, edge_index, size, p, apply_relu):
    """One GraphSAGE++ layer.  Returns (padded f32 output, n_targets, n_real_cols)."""
    S, T = int(size[0]), int(size[1])
    Cin = x_real.shape[1]
    h = p["wl_mean"].shape[1]

    cin_pad = _round_up(Cin + 1, 128)        # +1: ones column carries the degree
    # NOTE: for hidden widths > 64 on v6e/v7x, rounding to 256 fills the
    # 256-wide MXU; 128 is kept here (demo widths are small).
    h2_pad = _round_up(2 * h, 128)

    # Target tile: large (amortizes per-step overhead + finalize matmul), but
    # split so the "parallel" T axis has >= 2 tiles when T allows it (v7x has
    # two TensorCores; neutral on v5e/v6e).
    tt = min(256, _round_up(T, ROW))
    if _round_up(T, tt) // tt < 2 and tt >= 2 * ROW:
        tt = _round_up((T + 1) // 2, ROW)
    t_pad = _round_up(T, tt)

    # Source tile: streamed reduction axis.  Capped at 256 to bound the
    # statically-unrolled running-max loop; the grid's "arbitrary" axis covers
    # the rest.  Double-buffered footprint ~2-3 MiB << 32 MiB default scoped
    # VMEM on all generations (incl. v7x's 64 MiB physical).
    st = min(256, _round_up(S, ROW))
    s_pad = _round_up(S, st)

    # Dense padded adjacency with edge multiplicities: adj[t, s] = #edges s->t.
    # Edge counts < 256 are exact in bf16.
    # TODO(synk): for large sparse fan-outs keep CSR + scalar-prefetch gather
    # instead of densifying (O(E*C) instead of O(T*S*C)).
    src, tgt = edge_index[0], edge_index[1]
    adj = jnp.zeros((t_pad, s_pad), jnp.float32).at[tgt, src].add(1.0)
    adj = adj.astype(jnp.bfloat16)

    xf = x_real.astype(jnp.float32)

    # Padded bf16 source features + ones column (degree folded into the matmul).
    xp = jnp.zeros((s_pad, cin_pad), jnp.float32)
    xp = xp.at[:S, :Cin].set(xf[:S])
    xp = xp.at[:, Cin].set(1.0)
    xp = xp.astype(jnp.bfloat16)

    # Padded bf16 target features (targets are the first T source rows).
    xt = jnp.zeros((t_pad, cin_pad), jnp.float32).at[:T, :Cin].set(xf[:T])
    xt = xt.astype(jnp.bfloat16)

    # Three weight blocks (mean / max / self); no in-kernel concatenate:
    #   out = mean @ W[0] + max @ W[1] + x_tgt @ W[2] + b
    W = jnp.zeros((3, cin_pad, h2_pad), jnp.float32)
    W = W.at[0, :Cin, :h].set(p["wl_mean"])
    W = W.at[1, :Cin, h:2 * h].set(p["wl_max"])
    W = W.at[2, :Cin, :h].set(p["wr_mean"])
    W = W.at[2, :Cin, h:2 * h].set(p["wr_max"])
    W = W.astype(jnp.bfloat16)
    b = jnp.zeros((1, h2_pad), jnp.float32)
    b = b.at[:, :h].set(p["bl_mean"].reshape(1, h))
    b = b.at[:, h:2 * h].set(p["bl_max"].reshape(1, h))

    kern = functools.partial(sage_layer_kernel, ones_col=Cin,
                             apply_relu=apply_relu)
    out_pad = pl.pallas_call(
        kern,
        out_shape=jax.ShapeDtypeStruct((t_pad, h2_pad), jnp.float32),
        grid=(t_pad // tt, s_pad // st),
        in_specs=[
            pl.BlockSpec((tt, st), lambda i, k: (i, k)),                 # adj
            pl.BlockSpec((st, cin_pad), lambda i, k: (k, 0)),            # x (sources)
            pl.BlockSpec((tt, cin_pad), lambda i, k: (i, 0)),            # x_target
            pl.BlockSpec((3, cin_pad, h2_pad), lambda i, k: (0, 0, 0)),  # W blocks
            pl.BlockSpec((1, h2_pad), lambda i, k: (0, 0)),              # bias
        ],
        out_specs=pl.BlockSpec((tt, h2_pad), lambda i, k: (i, 0)),
        scratch_shapes=[pltpu.VMEM((tt, cin_pad), jnp.float32),          # sum (+deg)
                        pltpu.VMEM((tt, cin_pad), jnp.float32)],         # running max
        compiler_params=_CompilerParams(
            dimension_semantics=("parallel", "arbitrary")),
    )(adj, xp, xt, W, b)
    return out_pad, T, 2 * h


# ----------------------------------------------------------------------------
# Kernel 2: post_mp Linear + log_softmax (row tiled)
# ----------------------------------------------------------------------------
def post_mp_kernel(x_ref, w_ref, b_ref, out_ref):
    logits = jnp.dot(x_ref[...], w_ref[...],
                     preferred_element_type=jnp.float32) + b_ref[...]
    m = jnp.max(logits, axis=-1, keepdims=True)
    z = logits - m
    lse = jnp.log(jnp.sum(jnp.exp(z), axis=-1, keepdims=True))
    out_ref[...] = z - lse


def post_mp(x_pad, n_rows, n_feat, w, b):
    t_pad, f_pad = x_pad.shape
    C = w.shape[1]
    c_pad = _round_up(C, 128)

    # Row tile that always divides the (re)padded row count — no silent
    # assumption that t_pad is a multiple of 128.
    tt = min(256, t_pad)
    t2 = _round_up(t_pad, tt)
    if t2 != t_pad:
        x_pad = jnp.pad(x_pad, ((0, t2 - t_pad), (0, 0)))

    wp = jnp.zeros((f_pad, c_pad), jnp.float32).at[:n_feat, :C].set(w)
    # Padded class columns get a -1e30 bias so exp() underflows to 0 exactly.
    bp = jnp.full((1, c_pad), NEG, jnp.float32).at[:, :C].set(b.reshape(1, C))

    out = pl.pallas_call(
        post_mp_kernel,
        out_shape=jax.ShapeDtypeStruct((t2, c_pad), jnp.float32),
        grid=(t2 // tt,),
        in_specs=[
            pl.BlockSpec((tt, f_pad), lambda i: (i, 0)),
            pl.BlockSpec((f_pad, c_pad), lambda i: (0, 0)),
            pl.BlockSpec((1, c_pad), lambda i: (0, 0)),
        ],
        out_specs=pl.BlockSpec((tt, c_pad), lambda i: (i, 0)),
        compiler_params=_CompilerParams(dimension_semantics=("parallel",)),
    )(x_pad, wp, bp)
    return out[:n_rows, :C]


# ----------------------------------------------------------------------------
# Full model forward (padding / glue in plain JAX; hot path in Pallas kernels)
# ----------------------------------------------------------------------------
def graphsage_pp_da_forward(x, adjs, params):
    num_layers = len(params["layers"])
    x_real = x
    out_pad, T, F = None, x.shape[0], x.shape[1]
    for i, (edge_index, _, size) in enumerate(adjs):
        out_pad, T, F = sage_layer(x_real, edge_index, size,
                                   params["layers"][i],
                                   apply_relu=(i != num_layers - 1))
        x_real = out_pad[:T, :F]          # real rows/cols feed the next layer
    return post_mp(out_pad, T, F, params["w_post"], params["b_post"])


# ----------------------------------------------------------------------------
# Pure-JAX f32 reference (same math, no Pallas) used to sanity-check the kernels
# ----------------------------------------------------------------------------
def edge_index_to_dense(edge_index, size):
    n_src, n_tgt = size
    src, tgt = edge_index[0], edge_index[1]
    return jnp.zeros((n_tgt, n_src), jnp.float32).at[tgt, src].add(1.0)


def ref_forward(x, adjs, params):
    num_layers = len(params["layers"])
    for i, (edge_index, _, size) in enumerate(adjs):
        adj = edge_index_to_dense(edge_index, size)
        T = adj.shape[0]
        xt = x[:T]
        deg = adj.sum(axis=1, keepdims=True)
        mean_agg = (adj @ x) / jnp.maximum(deg, 1.0)
        masked = jnp.where((adj > 0)[:, :, None], x[None, :, :], NEG)
        max_agg = jnp.where(deg > 0, masked.max(axis=1), 0.0)
        p = params["layers"][i]
        h_mean = mean_agg @ p["wl_mean"] + p["bl_mean"] + xt @ p["wr_mean"]
        h_max = max_agg @ p["wl_max"] + p["bl_max"] + xt @ p["wr_max"]
        x = jnp.concatenate([h_mean, h_max], axis=1)
        if i != num_layers - 1:
            x = jax.nn.relu(x)
    logits = x @ params["w_post"] + params["b_post"]
    return jax.nn.log_softmax(logits, axis=-1)


# ----------------------------------------------------------------------------
# Deterministic parameter / input construction
# ----------------------------------------------------------------------------
def init_params(key, in_channels, hidden_channels_list, out_channels):
    layers = []
    for i, h in enumerate(hidden_channels_list):
        cin = in_channels if i == 0 else 2 * hidden_channels_list[i - 1]
        k = jax.random.fold_in(key, i)
        ks = jax.random.split(k, 6)
        layers.append(dict(
            wl_mean=0.1 * jax.random.normal(ks[0], (cin, h), jnp.float32),
            bl_mean=0.1 * jax.random.normal(ks[1], (1, h), jnp.float32),
            wr_mean=0.1 * jax.random.normal(ks[2], (cin, h), jnp.float32),
            wl_max=0.1 * jax.random.normal(ks[3], (cin, h), jnp.float32),
            bl_max=0.1 * jax.random.normal(ks[4], (1, h), jnp.float32),
            wr_max=0.1 * jax.random.normal(ks[5], (cin, h), jnp.float32),
        ))
    kp = jax.random.fold_in(key, 1000)
    kw, kb = jax.random.split(kp)
    c_last = 2 * hidden_channels_list[-1]
    return dict(
        layers=layers,
        w_post=0.1 * jax.random.normal(kw, (c_last, out_channels), jnp.float32),
        b_post=0.1 * jax.random.normal(kb, (1, out_channels), jnp.float32),
    )


def make_adj(key, n_src, n_tgt, n_rand_edges):
    ks, kt = jax.random.split(key)
    src = jax.random.randint(ks, (n_rand_edges,), 0, n_src, dtype=jnp.int32)
    tgt = jax.random.randint(kt, (n_rand_edges,), 0, n_tgt, dtype=jnp.int32)
    # NeighborSampler always keeps the target node itself among its sources.
    self_idx = jnp.arange(n_tgt, dtype=jnp.int32)
    src = jnp.concatenate([src, self_idx])
    tgt = jnp.concatenate([tgt, self_idx])
    edge_index = jnp.stack([src, tgt])
    return (edge_index, None, (n_src, n_tgt))


if __name__ == "__main__":
    in_channels = 8
    hidden_channels_list = [16, 16]
    out_channels = 4

    n_src0, n_tgt0, n_tgt1 = 32, 16, 8

    root = jax.random.PRNGKey(0)
    kx, ka0, ka1, kp = jax.random.split(root, 4)

    x = jax.random.normal(kx, (n_src0, in_channels), jnp.float32)
    adjs = [
        make_adj(ka0, n_src0, n_tgt0, 64),   # layer 0: 32 src -> 16 tgt
        make_adj(ka1, n_tgt0, n_tgt1, 32),   # layer 1: 16 src -> 8 tgt
    ]
    params = init_params(kp, in_channels, hidden_channels_list, out_channels)

    out = graphsage_pp_da_forward(x, adjs, params)
    out = jax.block_until_ready(out)

    ref = jax.block_until_ready(ref_forward(x, adjs, params))
    assert out.shape == (n_tgt1, out_channels)
    # Tolerance accounts for bf16 MXU operands + approx EUP reciprocal vs the
    # pure-f32 reference; dominant error for these magnitudes is a few 1e-3.
    assert jnp.allclose(out, ref, atol=2e-2, rtol=2e-2), "kernel output mismatch"

    print("KERNEL_OK")
</pallas_src>

<mosaic_0001>
module attributes {stable_mosaic.version = 11 : i64} {
  func.func @sage_layer_kernel(%arg0: i32, %arg1: i32, %arg2: memref<16x32xbf16, #tpu.memory_space<vmem>>, %arg3: memref<32x128xbf16, #tpu.memory_space<vmem>>, %arg4: memref<16x128xbf16, #tpu.memory_space<vmem>>, %arg5: memref<3x128x128xbf16, #tpu.memory_space<vmem>>, %arg6: memref<1x128xf32, #tpu.memory_space<vmem>>, %arg7: memref<16x128xf32, #tpu.memory_space<vmem>>, %arg8: memref<16x128xf32, #tpu.memory_space<vmem>>, %arg9: memref<16x128xf32, #tpu.memory_space<vmem>>) attributes {dimension_semantics = [#tpu.dimension_semantics<parallel>, #tpu.dimension_semantics<arbitrary>], iteration_bounds = array<i64: 1, 1>, scalar_prefetch = 0 : i64, scratch_operands = 2 : i64, tpu.core_type = #tpu.core_type<tc>, window_params = [{transform_indices = @transform_0, window_bounds = array<i64: 16, 32>}, {transform_indices = @transform_1, window_bounds = array<i64: 32, 128>}, {transform_indices = @transform_2, window_bounds = array<i64: 16, 128>}, {pipeline_mode = #tpu.pipeline_mode<synchronous>, transform_indices = @transform_3, window_bounds = array<i64: 3, 128, 128>}, {pipeline_mode = #tpu.pipeline_mode<synchronous>, transform_indices = @transform_4, window_bounds = array<i64: 1, 128>}, {transform_indices = @transform_5, window_bounds = array<i64: 16, 128>}]} {
    %c0_i32 = arith.constant 0 : i32
    %0 = arith.cmpi eq, %arg1, %c0_i32 : i32
    %1 = arith.extui %0 : i1 to i32
    %c0_i32_0 = arith.constant 0 : i32
    %2 = arith.cmpi ne, %1, %c0_i32_0 : i32
    scf.if %2 {
      %cst_23 = arith.constant 0.000000e+00 : f32
      %227 = vector.broadcast %cst_23 : f32 to vector<16x128xf32>
      %c0_24 = arith.constant 0 : index
      %c0_25 = arith.constant 0 : index
      %228 = vector.load %arg8[%c0_24, %c0_25] : memref<16x128xf32, #tpu.memory_space<vmem>>, vector<16x128xf32>
      tpu.vector_store %arg8[%c0_24, %c0_25], %227 {strides = array<i32>} : memref<16x128xf32, #tpu.memory_space<vmem>>, vector<16x128xf32>,
      %cst_26 = arith.constant -1.000000e+30 : f32
      %229 = vector.broadcast %cst_26 : f32 to vector<16x128xf32>
      %c0_27 = arith.constant 0 : index
      %c0_28 = arith.constant 0 : index
      %230 = vector.load %arg9[%c0_27, %c0_28] : memref<16x128xf32, #tpu.memory_space<vmem>>, vector<16x128xf32>
      tpu.vector_store %arg9[%c0_27, %c0_28], %229 {strides = array<i32>} : memref<16x128xf32, #tpu.memory_space<vmem>>, vector<16x128xf32>,
    } else {
    }
    %c0 = arith.constant 0 : index
    %c0_1 = arith.constant 0 : index
    %3 = vector.load %arg8[%c0, %c0_1] : memref<16x128xf32, #tpu.memory_space<vmem>>, vector<16x128xf32>
    %c0_2 = arith.constant 0 : index
    %c0_3 = arith.constant 0 : index
    %4 = vector.load %arg2[%c0_2, %c0_3] : memref<16x32xbf16, #tpu.memory_space<vmem>>, vector<16x32xbf16>
    %c0_4 = arith.constant 0 : index
    %c0_5 = arith.constant 0 : index
    %5 = vector.load %arg3[%c0_4, %c0_5] : memref<32x128xbf16, #tpu.memory_space<vmem>>, vector<32x128xbf16>
    %cst = arith.constant dense<0.000000e+00> : vector<16x128xf32>
    %6 = tpu.matmul %4, %5, %cst {dimension_numbers = #tpu.dot_dimension_numbers<[1], [0], [0], [1], [0, 0, 1, 1], [], []>} : vector<16x32xbf16>, vector<32x128xbf16>, vector<16x128xf32> -> vector<16x128xf32>
    %7 = arith.addf %3, %6 : vector<16x128xf32>
    %c0_6 = arith.constant 0 : index
    %c0_7 = arith.constant 0 : index
    %8 = vector.load %arg8[%c0_6, %c0_7] : memref<16x128xf32, #tpu.memory_space<vmem>>, vector<16x128xf32>
    tpu.vector_store %arg8[%c0_6, %c0_7], %7 {strides = array<i32>} : memref<16x128xf32, #tpu.memory_space<vmem>>, vector<16x128xf32>,
    %c0_i32_8 = arith.constant 0 : i32
    %c16_i32 = arith.constant 16 : i32
    %9 = arith.muli %c0_i32_8, %c16_i32 : i32
    %10 = tpu.assume_multiple %9, 16 : i32
    %11 = arith.index_cast %10 : i32 to index
    %c0_9 = arith.constant 0 : index
    %12 = vector.load %arg2[%11, %c0_9] : memref<16x32xbf16, #tpu.memory_space<vmem>>, vector<16x32xbf16>
    %cst_10 = arith.constant 0.000000e+00 : bf16
    %13 = vector.broadcast %cst_10 : bf16 to vector<16x32xbf16>
    %14 = arith.cmpf ogt, %12, %13 : vector<16x32xbf16>
    %cst_11 = arith.constant 0.000000e+00 : f32
    %cst_12 = arith.constant -1.000000e+30 : f32
    %15 = vector.broadcast %cst_11 : f32 to vector<16x32xf32>
    %16 = vector.broadcast %cst_12 : f32 to vector<16x32xf32>
    %17 = arith.select %14, %15, %16 : vector<16x32xi1>, vector<16x32xf32>
    %18 = arith.index_cast %10 : i32 to index
    %c0_13 = arith.constant 0 : index
    %19 = vector.load %arg9[%18, %c0_13] : memref<16x128xf32, #tpu.memory_space<vmem>>, vector<16x128xf32>
    %cst_14 = arith.constant -1.000000e+30 : f32
    %20 = vector.broadcast %cst_14 : f32 to vector<16x128xf32>
    %cst_15 = arith.constant -1.000000e+30 : f32
    %21 = vector.broadcast %cst_15 : f32 to vector<16x128xf32>
    %cst_16 = arith.constant -1.000000e+30 : f32
    %22 = vector.broadcast %cst_16 : f32 to vector<16x128xf32>
    %c0_17 = arith.constant 0 : index
    %c0_18 = arith.constant 0 : index
    %23 = vector.load %arg3[%c0_17, %c0_18] : memref<32x128xbf16, #tpu.memory_space<vmem>>, vector<16x128xbf16>
    %24 = arith.extf %23 : vector<16x128xbf16> to vector<16x128xf32>
    %25 = vector.extract_strided_slice %24 {offsets = [0, 0], sizes = [1, 128], strides = [1, 1]} : vector<16x128xf32> to vector<1x128xf32>
    %26 = vector.extract_strided_slice %17 {offsets = [0, 0], sizes = [16, 1], strides = [1, 1]} : vector<16x32xf32> to vector<16x1xf32>
    %27 = vector.broadcast %25 : vector<1x128xf32> to vector<16x128xf32>
    %28 = vector.broadcast %26 : vector<16x1xf32> to vector<16x128xf32>
    %29 = arith.addf %27, %28 : vector<16x128xf32>
    %30 = arith.maximumf %19, %29 : vector<16x128xf32>
    %31 = vector.extract_strided_slice %24 {offsets = [1, 0], sizes = [1, 128], strides = [1, 1]} : vector<16x128xf32> to vector<1x128xf32>
    %32 = vector.extract_strided_slice %17 {offsets = [0, 1], sizes = [16, 1], strides = [1, 1]} : vector<16x32xf32> to vector<16x1xf32>
    %33 = vector.broadcast %31 : vector<1x128xf32> to vector<16x128xf32>
    %34 = vector.broadcast %32 : vector<16x1xf32> to vector<16x128xf32>
    %35 = arith.addf %33, %34 : vector<16x128xf32>
    %36 = arith.maximumf %20, %35 : vector<16x128xf32>
    %37 = vector.extract_strided_slice %24 {offsets = [2, 0], sizes = [1, 128], strides = [1, 1]} : vector<16x128xf32> to vector<1x128xf32>
    %38 = vector.extract_strided_slice %17 {offsets = [0, 2], sizes = [16, 1], strides = [1, 1]} : vector<16x32xf32> to vector<16x1xf32>
    %39 = vector.broadcast %37 : vector<1x128xf32> to vector<16x128xf32>
    %40 = vector.broadcast %38 : vector<16x1xf32> to vector<16x128xf32>
    %41 = arith.addf %39, %40 : vector<16x128xf32>
    %42 = arith.maximumf %21, %41 : vector<16x128xf32>
    %43 = vector.extract_strided_slice %24 {offsets = [3, 0], sizes = [1, 128], strides = [1, 1]} : vector<16x128xf32> to vector<1x128xf32>
    %44 = vector.extract_strided_slice %17 {offsets = [0, 3], sizes = [16, 1], strides = [1, 1]} : vector<16x32xf32> to vector<16x1xf32>
    %45 = vector.broadcast %43 : vector<1x128xf32> to vector<16x128xf32>
    %46 = vector.broadcast %44 : vector<16x1xf32> to vector<16x128xf32>
    %47 = arith.addf %45, %46 : vector<16x128xf32>
    %48 = arith.maximumf %22, %47 : vector<16x128xf32>
    %49 = vector.extract_strided_slice %24 {offsets = [4, 0], sizes = [1, 128], strides = [1, 1]} : vector<16x128xf32> to vector<1x128xf32>
    %50 = vector.extract_strided_slice %17 {offsets = [0, 4], sizes = [16, 1], strides = [1, 1]} : vector<16x32xf32> to vector<16x1xf32>
    %51 = vector.broadcast %49 : vector<1x128xf32> to vector<16x128xf32>
    %52 = vector.broadcast %50 : vector<16x1xf32> to vector<16x128xf32>
    %53 = arith.addf %51, %52 : vector<16x128xf32>
    %54 = arith.maximumf %30, %53 : vector<16x128xf32>
    %55 = vector.extract_strided_slice %24 {offsets = [5, 0], sizes = [1, 128], strides = [1, 1]} : vector<16x128xf32> to vector<1x128xf32>
    %56 = vector.extract_strided_slice %17 {offsets = [0, 5], sizes = [16, 1], strides = [1, 1]} : vector<16x32xf32> to vector<16x1xf32>
    %57 = vector.broadcast %55 : vector<1x128xf32> to vector<16x128xf32>
    %58 = vector.broadcast %56 : vector<16x1xf32> to vector<16x128xf32>
    %59 = arith.addf %57, %58 : vector<16x128xf32>
    %60 = arith.maximumf %36, %59 : vector<16x128xf32>
    %61 = vector.extract_strided_slice %24 {offsets = [6, 0], sizes = [1, 128], strides = [1, 1]} : vector<16x128xf32> to vector<1x128xf32>
    %62 = vector.extract_strided_slice %17 {offsets = [0, 6], sizes = [16, 1], strides = [1, 1]} : vector<16x32xf32> to vector<16x1xf32>
    %63 = vector.broadcast %61 : vector<1x128xf32> to vector<16x128xf32>
    %64 = vector.broadcast %62 : vector<16x1xf32> to vector<16x128xf32>
    %65 = arith.addf %63, %64 : vector<16x128xf32>
    %66 = arith.maximumf %42, %65 : vector<16x128xf32>
    %67 = vector.extract_strided_slice %24 {offsets = [7, 0], sizes = [1, 128], strides = [1, 1]} : vector<16x128xf32> to vector<1x128xf32>
    %68 = vector.extract_strided_slice %17 {offsets = [0, 7], sizes = [16, 1], strides = [1, 1]} : vector<16x32xf32> to vector<16x1xf32>
    %69 = vector.broadcast %67 : vector<1x128xf32> to vector<16x128xf32>
    %70 = vector.broadcast %68 : vector<16x1xf32> to vector<16x128xf32>
    %71 = arith.addf %69, %70 : vector<16x128xf32>
    %72 = arith.maximumf %48, %71 : vector<16x128xf32>
    %73 = vector.extract_strided_slice %24 {offsets = [8, 0], sizes = [1, 128], strides = [1, 1]} : vector<16x128xf32> to vector<1x128xf32>
    %74 = vector.extract_strided_slice %17 {offsets = [0, 8], sizes = [16, 1], strides = [1, 1]} : vector<16x32xf32> to vector<16x1xf32>
    %75 = vector.broadcast %73 : vector<1x128xf32> to vector<16x128xf32>
    %76 = vector.broadcast %74 : vector<16x1xf32> to vector<16x128xf32>
    %77 = arith.addf %75, %76 : vector<16x128xf32>
    %78 = arith.maximumf %54, %77 : vector<16x128xf32>
    %79 = vector.extract_strided_slice %24 {offsets = [9, 0], sizes = [1, 128], strides = [1, 1]} : vector<16x128xf32> to vector<1x128xf32>
    %80 = vector.extract_strided_slice %17 {offsets = [0, 9], sizes = [16, 1], strides = [1, 1]} : vector<16x32xf32> to vector<16x1xf32>
    %81 = vector.broadcast %79 : vector<1x128xf32> to vector<16x128xf32>
    %82 = vector.broadcast %80 : vector<16x1xf32> to vector<16x128xf32>
    %83 = arith.addf %81, %82 : vector<16x128xf32>
    %84 = arith.maximumf %60, %83 : vector<16x128xf32>
    %85 = vector.extract_strided_slice %24 {offsets = [10, 0], sizes = [1, 128], strides = [1, 1]} : vector<16x128xf32> to vector<1x128xf32>
    %86 = vector.extract_strided_slice %17 {offsets = [0, 10], sizes = [16, 1], strides = [1, 1]} : vector<16x32xf32> to vector<16x1xf32>
    %87 = vector.broadcast %85 : vector<1x128xf32> to vector<16x128xf32>
    %88 = vector.broadcast %86 : vector<16x1xf32> to vector<16x128xf32>
    %89 = arith.addf %87, %88 : vector<16x128xf32>
    %90 = arith.maximumf %66, %89 : vector<16x128xf32>
    %91 = vector.extract_strided_slice %24 {offsets = [11, 0], sizes = [1, 128], strides = [1, 1]} : vector<16x128xf32> to vector<1x128xf32>
    %92 = vector.extract_strided_slice %17 {offsets = [0, 11], sizes = [16, 1], strides = [1, 1]} : vector<16x32xf32> to vector<16x1xf32>
    %93 = vector.broadcast %91 : vector<1x128xf32> to vector<16x128xf32>
    %94 = vector.broadcast %92 : vector<16x1xf32> to vector<16x128xf32>
    %95 = arith.addf %93, %94 : vector<16x128xf32>
    %96 = arith.maximumf %72, %95 : vector<16x128xf32>
    %97 = vector.extract_strided_slice %24 {offsets = [12, 0], sizes = [1, 128], strides = [1, 1]} : vector<16x128xf32> to vector<1x128xf32>
    %98 = vector.extract_strided_slice %17 {offsets = [0, 12], sizes = [16, 1], strides = [1, 1]} : vector<16x32xf32> to vector<16x1xf32>
    %99 = vector.broadcast %97 : vector<1x128xf32> to vector<16x128xf32>
    %100 = vector.broadcast %98 : vector<16x1xf32> to vector<16x128xf32>
    %101 = arith.addf %99, %100 : vector<16x128xf32>
    %102 = arith.maximumf %78, %101 : vector<16x128xf32>
    %103 = vector.extract_strided_slice %24 {offsets = [13, 0], sizes = [1, 128], strides = [1, 1]} : vector<16x128xf32> to vector<1x128xf32>
    %104 = vector.extract_strided_slice %17 {offsets = [0, 13], sizes = [16, 1], strides = [1, 1]} : vector<16x32xf32> to vector<16x1xf32>
    %105 = vector.broadcast %103 : vector<1x128xf32> to vector<16x128xf32>
    %106 = vector.broadcast %104 : vector<16x1xf32> to vector<16x128xf32>
    %107 = arith.addf %105, %106 : vector<16x128xf32>
    %108 = arith.maximumf %84, %107 : vector<16x128xf32>
    %109 = vector.extract_strided_slice %24 {offsets = [14, 0], sizes = [1, 128], strides = [1, 1]} : vector<16x128xf32> to vector<1x128xf32>
    %110 = vector.extract_strided_slice %17 {offsets = [0, 14], sizes = [16, 1], strides = [1, 1]} : vector<16x32xf32> to vector<16x1xf32>
    %111 = vector.broadcast %109 : vector<1x128xf32> to vector<16x128xf32>
    %112 = vector.broadcast %110 : vector<16x1xf32> to vector<16x128xf32>
    %113 = arith.addf %111, %112 : vector<16x128xf32>
    %114 = arith.maximumf %90, %113 : vector<16x128xf32>
    %115 = vector.extract_strided_slice %24 {offsets = [15, 0], sizes = [1, 128], strides = [1, 1]} : vector<16x128xf32> to vector<1x128xf32>
    %116 = vector.extract_strided_slice %17 {offsets = [0, 15], sizes = [16, 1], strides = [1, 1]} : vector<16x32xf32> to vector<16x1xf32>
    %117 = vector.broadcast %115 : vector<1x128xf32> to vector<16x128xf32>
    %118 = vector.broadcast %116 : vector<16x1xf32> to vector<16x128xf32>
    %119 = arith.addf %117, %118 : vector<16x128xf32>
    %120 = arith.maximumf %96, %119 : vector<16x128xf32>
    %c16 = arith.constant 16 : index
    %c0_19 = arith.constant 0 : index
    %121 = vector.load %arg3[%c16, %c0_19] : memref<32x128xbf16, #tpu.memory_space<vmem>>, vector<16x128xbf16>
    %122 = arith.extf %121 : vector<16x128xbf16> to vector<16x128xf32>
    %123 = vector.extract_strided_slice %122 {offsets = [0, 0], sizes = [1, 128], strides = [1, 1]} : vector<16x128xf32> to vector<1x128xf32>
    %124 = vector.extract_strided_slice %17 {offsets = [0, 16], sizes = [16, 1], strides = [1, 1]} : vector<16x32xf32> to vector<16x1xf32>
    %125 = vector.broadcast %123 : vector<1x128xf32> to vector<16x128xf32>
    %126 = vector.broadcast %124 : vector<16x1xf32> to vector<16x128xf32>
    %127 = arith.addf %125, %126 : vector<16x128xf32>
    %128 = arith.maximumf %102, %127 : vector<16x128xf32>
    %129 = vector.extract_strided_slice %122 {offsets = [1, 0], sizes = [1, 128], strides = [1, 1]} : vector<16x128xf32> to vector<1x128xf32>
    %130 = vector.extract_strided_slice %17 {offsets = [0, 17], sizes = [16, 1], strides = [1, 1]} : vector<16x32xf32> to vector<16x1xf32>
    %131 = vector.broadcast %129 : vector<1x128xf32> to vector<16x128xf32>
    %132 = vector.broadcast %130 : vector<16x1xf32> to vector<16x128xf32>
    %133 = arith.addf %131, %132 : vector<16x128xf32>
    %134 = arith.maximumf %108, %133 : vector<16x128xf32>
    %135 = vector.extract_strided_slice %122 {offsets = [2, 0], sizes = [1, 128], strides = [1, 1]} : vector<16x128xf32> to vector<1x128xf32>
    %136 = vector.extract_strided_slice %17 {offsets = [0, 18], sizes = [16, 1], strides = [1, 1]} : vector<16x32xf32> to vector<16x1xf32>
    %137 = vector.broadcast %135 : vector<1x128xf32> to vector<16x128xf32>
    %138 = vector.broadcast %136 : vector<16x1xf32> to vector<16x128xf32>
    %139 = arith.addf %137, %138 : vector<16x128xf32>
    %140 = arith.maximumf %114, %139 : vector<16x128xf32>
    %141 = vector.extract_strided_slice %122 {offsets = [3, 0], sizes = [1, 128], strides = [1, 1]} : vector<16x128xf32> to vector<1x128xf32>
    %142 = vector.extract_strided_slice %17 {offsets = [0, 19], sizes = [16, 1], strides = [1, 1]} : vector<16x32xf32> to vector<16x1xf32>
    %143 = vector.broadcast %141 : vector<1x128xf32> to vector<16x128xf32>
    %144 = vector.broadcast %142 : vector<16x1xf32> to vector<16x128xf32>
    %145 = arith.addf %143, %144 : vector<16x128xf32>
    %146 = arith.maximumf %120, %145 : vector<16x128xf32>
    %147 = vector.extract_strided_slice %122 {offsets = [4, 0], sizes = [1, 128], strides = [1, 1]} : vector<16x128xf32> to vector<1x128xf32>
    %148 = vector.extract_strided_slice %17 {offsets = [0, 20], sizes = [16, 1], strides = [1, 1]} : vector<16x32xf32> to vector<16x1xf32>
    %149 = vector.broadcast %147 : vector<1x128xf32> to vector<16x128xf32>
    %150 = vector.broadcast %148 : vector<16x1xf32> to vector<16x128xf32>
    %151 = arith.addf %149, %150 : vector<16x128xf32>
    %152 = arith.maximumf %128, %151 : vector<16x128xf32>
    %153 = vector.extract_strided_slice %122 {offsets = [5, 0], sizes = [1, 128], strides = [1, 1]} : vector<16x128xf32> to vector<1x128xf32>
    %154 = vector.extract_strided_slice %17 {offsets = [0, 21], sizes = [16, 1], strides = [1, 1]} : vector<16x32xf32> to vector<16x1xf32>
    %155 = vector.broadcast %153 : vector<1x128xf32> to vector<16x128xf32>
    %156 = vector.broadcast %154 : vector<16x1xf32> to vector<16x128xf32>
    %157 = arith.addf %155, %156 : vector<16x128xf32>
    %158 = arith.maximumf %134, %157 : vector<16x128xf32>
    %159 = vector.extract_strided_slice %122 {offsets = [6, 0], sizes = [1, 128], strides = [1, 1]} : vector<16x128xf32> to vector<1x128xf32>
    %160 = vector.extract_strided_slice %17 {offsets = [0, 22], sizes = [16, 1], strides = [1, 1]} : vector<16x32xf32> to vector<16x1xf32>
    %161 = vector.broadcast %159 : vector<1x128xf32> to vector<16x128xf32>
    %162 = vector.broadcast %160 : vector<16x1xf32> to vector<16x128xf32>
    %163 = arith.addf %161, %162 : vector<16x128xf32>
    %164 = arith.maximumf %140, %163 : vector<16x128xf32>
    %165 = vector.extract_strided_slice %122 {offsets = [7, 0], sizes = [1, 128], strides = [1, 1]} : vector<16x128xf32> to vector<1x128xf32>
    %166 = vector.extract_strided_slice %17 {offsets = [0, 23], sizes = [16, 1], strides = [1, 1]} : vector<16x32xf32> to vector<16x1xf32>
    %167 = vector.broadcast %165 : vector<1x128xf32> to vector<16x128xf32>
    %168 = vector.broadcast %166 : vector<16x1xf32> to vector<16x128xf32>
    %169 = arith.addf %167, %168 : vector<16x128xf32>
    %170 = arith.maximumf %146, %169 : vector<16x128xf32>
    %171 = vector.extract_strided_slice %122 {offsets = [8, 0], sizes = [1, 128], strides = [1, 1]} : vector<16x128xf32> to vector<1x128xf32>
    %172 = vector.extract_strided_slice %17 {offsets = [0, 24], sizes = [16, 1], strides = [1, 1]} : vector<16x32xf32> to vector<16x1xf32>
    %173 = vector.broadcast %171 : vector<1x128xf32> to vector<16x128xf32>
    %174 = vector.broadcast %172 : vector<16x1xf32> to vector<16x128xf32>
    %175 = arith.addf %173, %174 : vector<16x128xf32>
    %176 = arith.maximumf %152, %175 : vector<16x128xf32>
    %177 = vector.extract_strided_slice %122 {offsets = [9, 0], sizes = [1, 128], strides = [1, 1]} : vector<16x128xf32> to vector<1x128xf32>
    %178 = vector.extract_strided_slice %17 {offsets = [0, 25], sizes = [16, 1], strides = [1, 1]} : vector<16x32xf32> to vector<16x1xf32>
    %179 = vector.broadcast %177 : vector<1x128xf32> to vector<16x128xf32>
    %180 = vector.broadcast %178 : vector<16x1xf32> to vector<16x128xf32>
    %181 = arith.addf %179, %180 : vector<16x128xf32>
    %182 = arith.maximumf %158, %181 : vector<16x128xf32>
    %183 = vector.extract_strided_slice %122 {offsets = [10, 0], sizes = [1, 128], strides = [1, 1]} : vector<16x128xf32> to vector<1x128xf32>
    %184 = vector.extract_strided_slice %17 {offsets = [0, 26], sizes = [16, 1], strides = [1, 1]} : vector<16x32xf32> to vector<16x1xf32>
    %185 = vector.broadcast %183 : vector<1x128xf32> to vector<16x128xf32>
    %186 = vector.broadcast %184 : vector<16x1xf32> to vector<16x128xf32>
    %187 = arith.addf %185, %186 : vector<16x128xf32>
    %188 = arith.maximumf %164, %187 : vector<16x128xf32>
    %189 = vector.extract_strided_slice %122 {offsets = [11, 0], sizes = [1, 128], strides = [1, 1]} : vector<16x128xf32> to vector<1x128xf32>
    %190 = vector.extract_strided_slice %17 {offsets = [0, 27], sizes = [16, 1], strides = [1, 1]} : vector<16x32xf32> to vector<16x1xf32>
    %191 = vector.broadcast %189 : vector<1x128xf32> to vector<16x128xf32>
    %192 = vector.broadcast %190 : vector<16x1xf32> to vector<16x128xf32>
    %193 = arith.addf %191, %192 : vector<16x128xf32>
    %194 = arith.maximumf %170, %193 : vector<16x128xf32>
    %195 = vector.extract_strided_slice %122 {offsets = [12, 0], sizes = [1, 128], strides = [1, 1]} : vector<16x128xf32> to vector<1x128xf32>
    %196 = vector.extract_strided_slice %17 {offsets = [0, 28], sizes = [16, 1], strides = [1, 1]} : vector<16x32xf32> to vector<16x1xf32>
    %197 = vector.broadcast %195 : vector<1x128xf32> to vector<16x128xf32>
    %198 = vector.broadcast %196 : vector<16x1xf32> to vector<16x128xf32>
    %199 = arith.addf %197, %198 : vector<16x128xf32>
    %200 = arith.maximumf %176, %199 : vector<16x128xf32>
    %201 = vector.extract_strided_slice %122 {offsets = [13, 0], sizes = [1, 128], strides = [1, 1]} : vector<16x128xf32> to vector<1x128xf32>
    %202 = vector.extract_strided_slice %17 {offsets = [0, 29], sizes = [16, 1], strides = [1, 1]} : vector<16x32xf32> to vector<16x1xf32>
    %203 = vector.broadcast %201 : vector<1x128xf32> to vector<16x128xf32>
    %204 = vector.broadcast %202 : vector<16x1xf32> to vector<16x128xf32>
    %205 = arith.addf %203, %204 : vector<16x128xf32>
    %206 = arith.maximumf %182, %205 : vector<16x128xf32>
    %207 = vector.extract_strided_slice %122 {offsets = [14, 0], sizes = [1, 128], strides = [1, 1]} : vector<16x128xf32> to vector<1x128xf32>
    %208 = vector.extract_strided_slice %17 {offsets = [0, 30], sizes = [16, 1], strides = [1, 1]} : vector<16x32xf32> to vector<16x1xf32>
    %209 = vector.broadcast %207 : vector<1x128xf32> to vector<16x128xf32>
    %210 = vector.broadcast %208 : vector<16x1xf32> to vector<16x128xf32>
    %211 = arith.addf %209, %210 : vector<16x128xf32>
    %212 = arith.maximumf %188, %211 : vector<16x128xf32>
    %213 = vector.extract_strided_slice %122 {offsets = [15, 0], sizes = [1, 128], strides = [1, 1]} : vector<16x128xf32> to vector<1x128xf32>
    %214 = vector.extract_strided_slice %17 {offsets = [0, 31], sizes = [16, 1], strides = [1, 1]} : vector<16x32xf32> to vector<16x1xf32>
    %215 = vector.broadcast %213 : vector<1x128xf32> to vector<16x128xf32>
    %216 = vector.broadcast %214 : vector<16x1xf32> to vector<16x128xf32>
    %217 = arith.addf %215, %216 : vector<16x128xf32>
    %218 = arith.maximumf %194, %217 : vector<16x128xf32>
    %219 = arith.maximumf %200, %206 : vector<16x128xf32>
    %220 = arith.maximumf %219, %212 : vector<16x128xf32>
    %221 = arith.maximumf %220, %218 : vector<16x128xf32>
    %222 = arith.index_cast %10 : i32 to index
    %c0_20 = arith.constant 0 : index
    %223 = vector.load %arg9[%222, %c0_20] : memref<16x128xf32, #tpu.memory_space<vmem>>, vector<16x128xf32>
    tpu.vector_store %arg9[%222, %c0_20], %221 {strides = array<i32>} : memref<16x128xf32, #tpu.memory_space<vmem>>, vector<16x128xf32>,
    %c1_i32 = arith.constant 1 : i32
    %c0_i32_21 = arith.constant 0 : i32
    %224 = arith.cmpi eq, %arg1, %c0_i32_21 : i32
    %225 = arith.extui %224 : i1 to i32
    %c0_i32_22 = arith.constant 0 : i32
    %226 = arith.cmpi ne, %225, %c0_i32_22 : i32
    scf.if %226 {
      %c0_23 = arith.constant 0 : index
      %c0_24 = arith.constant 0 : index
      %227 = vector.load %arg8[%c0_23, %c0_24] : memref<16x128xf32, #tpu.memory_space<vmem>>, vector<16x128xf32>
      %228 = vector.extract_strided_slice %227 {offsets = [0, 8], sizes = [16, 1], strides = [1, 1]} : vector<16x128xf32> to vector<16x1xf32>
      %cst_25 = arith.constant 1.000000e+00 : f32
      %229 = vector.broadcast %cst_25 : f32 to vector<16x1xf32>
      %230 = arith.maximumf %228, %229 : vector<16x1xf32>
      %231 = tpu.reciprocal %230 {approx = true} : vector<16x1xf32> -> vector<16x1xf32>
      %232 = vector.broadcast %231 : vector<16x1xf32> to vector<16x128xf32>
      %233 = arith.mulf %227, %232 : vector<16x128xf32>
      %234 = arith.truncf %233 : vector<16x128xf32> to vector<16x128xbf16>
      %cst_26 = arith.constant 0.000000e+00 : f32
      %235 = vector.broadcast %cst_26 : f32 to vector<16x1xf32>
      %236 = arith.cmpf ogt, %228, %235 : vector<16x1xf32>
      %c0_27 = arith.constant 0 : index
      %c0_28 = arith.constant 0 : index
      %237 = vector.load %arg9[%c0_27, %c0_28] : memref<16x128xf32, #tpu.memory_space<vmem>>, vector<16x128xf32>
      %cst_29 = arith.constant 0.000000e+00 : f32
      %238 = vector.shape_cast %236 : vector<16x1xi1> to vector<16x1xi1>
      %239 = vector.broadcast %238 : vector<16x1xi1> to vector<16x128xi1>
      %240 = vector.broadcast %cst_29 : f32 to vector<16x128xf32>
      %241 = arith.select %239, %237, %240 : vector<16x128xi1>, vector<16x128xf32>
      %242 = arith.truncf %241 : vector<16x128xf32> to vector<16x128xbf16>
      %c0_30 = arith.constant 0 : index
      %c0_31 = arith.constant 0 : index
      %c0_32 = arith.constant 0 : index
      %243 = vector.load %arg5[%c0_30, %c0_31, %c0_32] : memref<3x128x128xbf16, #tpu.memory_space<vmem>>, vector<1x128x128xbf16>
      %244 = vector.shape_cast %243 : vector<1x128x128xbf16> to vector<128x128xbf16>
      %cst_33 = arith.constant dense<0.000000e+00> : vector<16x128xf32>
      %245 = tpu.matmul %234, %244, %cst_33 {dimension_numbers = #tpu.dot_dimension_numbers<[1], [0], [0], [1], [0, 0, 1, 1], [], []>} : vector<16x128xbf16>, vector<128x128xbf16>, vector<16x128xf32> -> vector<16x128xf32>
      %c1 = arith.constant 1 : index
      %c0_34 = arith.constant 0 : index
      %c0_35 = arith.constant 0 : index
      %246 = vector.load %arg5[%c1, %c0_34, %c0_35] : memref<3x128x128xbf16, #tpu.memory_space<vmem>>, vector<1x128x128xbf16>
      %247 = vector.shape_cast %246 : vector<1x128x128xbf16> to vector<128x128xbf16>
      %cst_36 = arith.constant dense<0.000000e+00> : vector<16x128xf32>
      %248 = tpu.matmul %242, %247, %cst_36 {dimension_numbers = #tpu.dot_dimension_numbers<[1], [0], [0], [1], [0, 0, 1, 1], [], []>} : vector<16x128xbf16>, vector<128x128xbf16>, vector<16x128xf32> -> vector<16x128xf32>
      %249 = arith.addf %245, %248 : vector<16x128xf32>
      %c0_37 = arith.constant 0 : index
      %c0_38 = arith.constant 0 : index
      %250 = vector.load %arg4[%c0_37, %c0_38] : memref<16x128xbf16, #tpu.memory_space<vmem>>, vector<16x128xbf16>
      %c2 = arith.constant 2 : index
      %c0_39 = arith.constant 0 : index
      %c0_40 = arith.constant 0 : index
      %251 = vector.load %arg5[%c2, %c0_39, %c0_40] : memref<3x128x128xbf16, #tpu.memory_space<vmem>>, vector<1x128x128xbf16>
      %252 = vector.shape_cast %251 : vector<1x128x128xbf16> to vector<128x128xbf16>
      %cst_41 = arith.constant dense<0.000000e+00> : vector<16x128xf32>
      %253 = tpu.matmul %250, %252, %cst_41 {dimension_numbers = #tpu.dot_dimension_numbers<[1], [0], [0], [1], [0, 0, 1, 1], [], []>} : vector<16x128xbf16>, vector<128x128xbf16>, vector<16x128xf32> -> vector<16x128xf32>
      %254 = arith.addf %249, %253 : vector<16x128xf32>
      %c0_42 = arith.constant 0 : index
      %c0_43 = arith.constant 0 : index
      %255 = vector.load %arg6[%c0_42, %c0_43] : memref<1x128xf32, #tpu.memory_space<vmem>>, vector<1x128xf32>
      %256 = vector.broadcast %255 : vector<1x128xf32> to vector<16x128xf32>
      %257 = arith.addf %254, %256 : vector<16x128xf32>
      %cst_44 = arith.constant 0.000000e+00 : f32
      %258 = vector.broadcast %cst_44 : f32 to vector<16x128xf32>
      %259 = arith.maximumf %257, %258 : vector<16x128xf32>
      %c0_45 = arith.constant 0 : index
      %c0_46 = arith.constant 0 : index
      %260 = vector.load %arg7[%c0_45, %c0_46] : memref<16x128xf32, #tpu.memory_space<vmem>>, vector<16x128xf32>
      tpu.vector_store %arg7[%c0_45, %c0_46], %259 {strides = array<i32>} : memref<16x128xf32, #tpu.memory_space<vmem>>, vector<16x128xf32>,
    } else {
    }
    return
  }
  func.func @transform_0(%arg0: i32, %arg1: i32) -> (i32, i32) {
    %c0_i32 = arith.constant 0 : i32
    return %arg0, %arg1 : i32, i32
  }
  func.func @transform_1(%arg0: i32, %arg1: i32) -> (i32, i32) {
    %c0_i32 = arith.constant 0 : i32
    %c0_i32_0 = arith.constant 0 : i32
    return %arg1, %c0_i32 : i32, i32
  }
  func.func @transform_2(%arg0: i32, %arg1: i32) -> (i32, i32) {
    %c0_i32 = arith.constant 0 : i32
    %c0_i32_0 = arith.constant 0 : i32
    return %arg0, %c0_i32 : i32, i32
  }
  func.func @transform_3(%arg0: i32, %arg1: i32) -> (i32, i32, i32) {
    %c0_i32 = arith.constant 0 : i32
    %c0_i32_0 = arith.constant 0 : i32
    %c0_i32_1 = arith.constant 0 : i32
    %c0_i32_2 = arith.constant 0 : i32
    return %c0_i32, %c0_i32_0, %c0_i32_1 : i32, i32, i32
  }
  func.func @transform_4(%arg0: i32, %arg1: i32) -> (i32, i32) {
    %c0_i32 = arith.constant 0 : i32
    %c0_i32_0 = arith.constant 0 : i32
    %c0_i32_1 = arith.constant 0 : i32
    return %c0_i32, %c0_i32_0 : i32, i32
  }
  func.func @transform_5(%arg0: i32, %arg1: i32) -> (i32, i32) {
    %c0_i32 = arith.constant 0 : i32
    %c0_i32_0 = arith.constant 0 : i32
    return %arg0, %c0_i32 : i32, i32
  }
}

</mosaic_0001>

<llo_original>
// kernel: tpu_custom_call.1
$region0: #{tpu_custom_call.1}
  #allocation0 [shape = 'u32[]', space=smem, size = 0x4, offset = 0x4, fixed_abs, tag = 'smem constant byte address 0x4 - core index']
  #allocation1 [shape = 'u32[72,128]{1,0:T(1,128)}', space=vmem, size = 0x9000, scoped, tag = 'internal scratch']
  #allocation2 [shape = 'f32[16,128]{1,0:T(8,128)}', space=vmem, size = 0x2000, scoped, tag = 'scratch operand']
  #allocation3 [shape = 'f32[16,128]{1,0:T(8,128)}', space=vmem, size = 0x2000, scoped, tag = 'scratch operand']
  %s0 = inlined_call_operand.hbm [shape: bf16[16,32], index: 0, kind: input, shape index: {}]
  %s1 = inlined_call_operand.hbm [shape: bf16[32,128], index: 1, kind: input, shape index: {}]
  %s2 = inlined_call_operand.hbm [shape: bf16[16,128], index: 2, kind: input, shape index: {}]
  %s3 = inlined_call_operand.hbm [shape: bf16[3,128,128], index: 3, kind: input, shape index: {}]
  %s4 = inlined_call_operand.vmem [shape: f32[1,128], index: 4, kind: input, shape index: {}]
  %s5 = inlined_call_operand.hbm [shape: f32[16,128], index: 5, kind: output, shape index: {}]
  %s6 = sld [smem:[#allocation0]]
  $region54: #{tpu_custom_call.1} parent=0
    _
  %s8 = ssub.s32 1, %s6
  %s9 = scalar_select 0, %s8, %s6
  $region1: #{tpu_custom_call.1} parent=0
    #allocation4 [shape = 'u8[4096]{0}', space=vmem, size = 0x1000, scoped, tag = 'input window, operand 0, single buffered']
    #allocation5 [shape = 's32[1]{0}', space=sflag, size = 0x4, scoped, tag = 'scoped memory for tpu_custom_call.1']
    #allocation6 [shape = 's32[1]{0}', space=sflag, size = 0x4, scoped, tag = 'scoped memory for tpu_custom_call.1']
    #allocation7 [shape = 'u8[8192]{0}', space=vmem, size = 0x2000, scoped, tag = 'input window, operand 1, single buffered']
    #allocation8 [shape = 's32[1]{0}', space=sflag, size = 0x4, scoped, tag = 'scoped memory for tpu_custom_call.1']
    #allocation9 [shape = 'u8[4096]{0}', space=vmem, size = 0x1000, scoped, tag = 'input window, operand 2, single buffered']
    #allocation10 [shape = 'u8[98304]{0}', space=vmem, size = 0x18000, scoped, tag = 'input window, operand 3, single buffered']
    #allocation11 [shape = 's32[1]{0}', space=sflag, size = 0x4, scoped, tag = 'scoped memory for tpu_custom_call.1']
    #allocation12 [shape = 'u8[8192]{0}', space=vmem, size = 0x2000, scoped, tag = 'output window, operand 0, single buffered']
    %10 = vsyncpa [#allocation5], 0
    %11 = vsyncpa [#allocation8], 0
    %12 = vsyncpa [#allocation11], 0
    %13 = vsyncpa [#allocation6], 0
    // Predicated region
    $region2: #{tpu_custom_call.1} parent=1 // pred_check
      _
    $region3: #{tpu_custom_call.1} parent=1 // pred_check_branch
      %15 = sbr.rel (0) target = $region5
    $region4: #{tpu_custom_call.1} parent=1 // pred_region
      %17 = vsyncadd [#allocation5], 0
      %s18 = sshll.u32 %s0, 4
      %s19 = int_to_ptr.hbm [resolvable:$true] %s18
      %s20 = sshll.u32 [#allocation4], 4
      %s21 = int_to_ptr.vmem [resolvable:$true] %s20
      %26 = dma.hbm_to_vmem [thread:$0]  %s19, 128, %s21, [#allocation5], 64, 64, 4
    $region5: #{tpu_custom_call.1} parent=1 // pred_fallthru
      _
    // Predicated region
    $region6: #{tpu_custom_call.1} parent=1 // pred_check
      _
    $region7: #{tpu_custom_call.1} parent=1 // pred_check_branch
      %28 = sbr.rel (0) target = $region9
    $region8: #{tpu_custom_call.1} parent=1 // pred_region
      %30 = vsyncadd [#allocation8], 0
      %s31 = sshll.u32 %s1, 4
      %s32 = int_to_ptr.hbm [resolvable:$true] %s31
      %s33 = sshll.u32 [#allocation7], 4
      %s34 = int_to_ptr.vmem [resolvable:$true] %s33
      %39 = dma.hbm_to_vmem [thread:$0]  %s32, 256, %s34, [#allocation8], 64, 64, 4
    $region9: #{tpu_custom_call.1} parent=1 // pred_fallthru
      _
    // Predicated region
    $region10: #{tpu_custom_call.1} parent=1 // pred_check
      _
    $region11: #{tpu_custom_call.1} parent=1 // pred_check_branch
      %41 = sbr.rel (0) target = $region13
    $region12: #{tpu_custom_call.1} parent=1 // pred_region
      %43 = vsyncadd [#allocation8], 0
      %s44 = sshll.u32 %s2, 4
      %s45 = int_to_ptr.hbm [resolvable:$true] %s44
      %s46 = sshll.u32 [#allocation9], 4
      %s47 = int_to_ptr.vmem [resolvable:$true] %s46
      %52 = dma.hbm_to_vmem [thread:$0]  %s45, 128, %s47, [#allocation8], 64, 64, 4
    $region13: #{tpu_custom_call.1} parent=1 // pred_fallthru
      _
    // Predicated region
    $region14: #{tpu_custom_call.1} parent=1 // pred_check
      _
    $region15: #{tpu_custom_call.1} parent=1 // pred_check_branch
      %54 = sbr.rel (0) target = $region17
    $region16: #{tpu_custom_call.1} parent=1 // pred_region
      %56 = vsyncadd [#allocation11], 0
      %s57 = sshll.u32 %s3, 4
      %s58 = int_to_ptr.hbm [resolvable:$true] %s57
      %s59 = sshll.u32 [#allocation10], 4
      %s60 = int_to_ptr.vmem [resolvable:$true] %s59
      %65 = dma.hbm_to_vmem [thread:$0]  %s58, 3072, %s60, [#allocation11], 64, 64, 4
    $region17: #{tpu_custom_call.1} parent=1 // pred_fallthru
      _
    // Predicated region
    $region18: #{tpu_custom_call.1} parent=1 // pred_check
      _
    $region19: #{tpu_custom_call.1} parent=1 // pred_check_branch
      %67 = sbr.rel (0) target = $region21
    $region20: #{tpu_custom_call.1} parent=1 // pred_region
      _
    $region21: #{tpu_custom_call.1} parent=1 // pred_fallthru
      _
    // Predicated region
    $region22: #{tpu_custom_call.1} parent=1 // pred_check
      _
    $region23: #{tpu_custom_call.1} parent=1 // pred_check_branch
      %69 = sbr.rel (0) target = $region25
    $region24: #{tpu_custom_call.1} parent=1 // pred_region
      %71 = dma.done [#allocation5], 128
    $region25: #{tpu_custom_call.1} parent=1 // pred_fallthru
      _
    // Predicated region
    $region26: #{tpu_custom_call.1} parent=1 // pred_check
      _
    $region27: #{tpu_custom_call.1} parent=1 // pred_check_branch
      %73 = sbr.rel (0) target = $region29
    $region28: #{tpu_custom_call.1} parent=1 // pred_region
      %75 = dma.done [#allocation8], 256
    $region29: #{tpu_custom_call.1} parent=1 // pred_fallthru
      _
    // Predicated region
    $region30: #{tpu_custom_call.1} parent=1 // pred_check
      _
    $region31: #{tpu_custom_call.1} parent=1 // pred_check_branch
      %77 = sbr.rel (0) target = $region33
    $region32: #{tpu_custom_call.1} parent=1 // pred_region
      %79 = dma.done [#allocation8], 128
    $region33: #{tpu_custom_call.1} parent=1 // pred_fallthru
      _
    // Predicated region
    $region34: #{tpu_custom_call.1} parent=1 // pred_check
      _
    $region35: #{tpu_custom_call.1} parent=1 // pred_check_branch
      %81 = sbr.rel (0) target = $region37
    $region36: #{tpu_custom_call.1} parent=1 // pred_region
      %83 = dma.done [#allocation11], 3072
    $region37: #{tpu_custom_call.1} parent=1 // pred_fallthru
      _
    %p85 = scmp.eq.s32.totalorder 0, 0
    // Predicated region
    $region38: #{tpu_custom_call.1} parent=1 // pred_check
      %p86 = pneg %p85
    $region39: #{tpu_custom_call.1} parent=1 // pred_check_branch
      %88 = sbr.rel (%p86) target = $region41
    $region40: #{tpu_custom_call.1} parent=1 // pred_region
      %89 = vst [vmem:[#allocation2] sm:$0xff] 0.0
      %90 = vst [vmem:[#allocation2 + $0x8] sm:$0xff] 0.0
      %91 = vst [vmem:[#allocation3] sm:$0xff] -1e+30
      %92 = vst [vmem:[#allocation3 + $0x8] sm:$0xff] -1e+30
    $region41: #{tpu_custom_call.1} parent=1 // pred_fallthru
      _
    %v93 = vld [vmem:[#allocation2] sm:$0xff]
    %v94 = vld [vmem:[#allocation2 + $0x8] sm:$0xff]
    %v95 = vld [vmem:[#allocation4] sm:$0xf]
    %v96 = vld [vmem:[#allocation4 + $0x4] sm:$0xf]
    %v97 = vld [vmem:[#allocation7] sm:$0xf]
    %v98 = vld [vmem:[#allocation7 + $0x4] sm:$0xf]
    %v99 = vld [vmem:[#allocation7 + $0x8] sm:$0xf]
    %v100 = vld [vmem:[#allocation7 + $0xc] sm:$0xf]
    %v103 = vunpack.c.l.b16 %v95
    %v104 = vunpack.c.l.b16 %v96
    %v105 = vpack.c.b16 %v104, %v103
    %v110 = vunpack.c.l.b16 %v97
    %v111 = vunpack.c.l.b16 %v98
    %v112 = vunpack.c.l.b16 %v99
    %v113 = vunpack.c.l.b16 %v100
    %v114 = vpack.c.b16 %v111, %v110
    %v115 = vpack.c.b16 %v113, %v112
    %vm118 = vcmask 261120
    %v120 = vsel %vm118, %v105, 0
    %122 = vmatpush.bf16.msra.mxu0 0
    %123 = vmatpush.bf16.msra.mxu0 0
    %124 = vmatpush.bf16.msra.mxu0 0
    %125 = vmatpush.bf16.msra.mxu0 0
    %126 = vmatpush.bf16.msra.mxu0 0
    %127 = vmatpush.bf16.msra.mxu0 0
    %128 = vmatpush.bf16.msra.mxu0 %v115
    %129 = vmatpush.bf16.msra.mxu0 %v114
    %130 = vmatmul.bf16.gmra.mxu0 %v120
    %v131 = vpop.f32.mrf.mxu0
    %v132 = vadd.f32 0.0, %v131
    %v133 = vpop.f32.mrf.mxu0
    %v134 = vadd.f32 0.0, %v133
    %135 = vdwg.mxu0
    %v136 = vadd.f32 %v93, %v132
    %v137 = vadd.f32 %v94, %v134
    %138 = vst [vmem:[#allocation2] sm:$0xff] %v136
    %139 = vst [vmem:[#allocation2 + $0x8] sm:$0xff] %v137
    %v140 = vld [vmem:[#allocation4] sm:$0xf]
    %v141 = vld [vmem:[#allocation4 + $0x4] sm:$0xf]
    %v142 = vunpack.c.l.bf16 %v140
    %v143 = vunpack.c.l.bf16 %v141
    %vm144 = vcmp.gt.f32.partialorder %v142, 0.0
    %vm145 = vcmp.gt.f32.partialorder %v143, 0.0
    %v146 = vsel %vm144, 0.0, -1e+30
    %v147 = vsel %vm145, 0.0, -1e+30
    %v148 = vld [vmem:[#allocation3] sm:$0xff]
    %v149 = vld [vmem:[#allocation3 + $0x8] sm:$0xff]
    %v150 = vld [vmem:[#allocation7] sm:$0xf]
    %v151 = vld [vmem:[#allocation7 + $0x4] sm:$0xf]
    %v152 = vunpack.c.l.bf16 %v150
    %v153 = vunpack.c.l.bf16 %v151
    %v154 = vperm.slane %v152, 0
    %156 = vset.pattern.permute.xlu0 0
    %157 = vperm.xlu0 %156, %v146
    %v158 = vpop.permute.xlu0 %157
    %161 = vset.pattern.permute.xlu0 0
    %162 = vperm.xlu0 %161, %v147
    %v163 = vpop.permute.xlu0 %162
    %v165 = vadd.f32 %v154, %v158
    %v166 = vadd.f32 %v154, %v163
    %v167 = vmax.f32 %v148, %v165
    %v168 = vmax.f32 %v149, %v166
    %v169 = vperm.slane %v152, 1
    %170 = vset.pattern.permute.xlu0 1
    %171 = vperm.xlu0 %170, %v146
    %v172 = vpop.permute.xlu0 %171
    %174 = vset.pattern.permute.xlu0 1
    %175 = vperm.xlu0 %174, %v147
    %v176 = vpop.permute.xlu0 %175
    %v178 = vadd.f32 %v169, %v172
    %v179 = vadd.f32 %v169, %v176
    %v180 = vmax.f32 %v178, -1e+30
    %v181 = vmax.f32 %v179, -1e+30
    %v182 = vperm.slane %v152, 2
    %183 = vset.pattern.permute.xlu0 2
    %184 = vperm.xlu0 %183, %v146
    %v185 = vpop.permute.xlu0 %184
    %187 = vset.pattern.permute.xlu0 2
    %188 = vperm.xlu0 %187, %v147
    %v189 = vpop.permute.xlu0 %188
    %v191 = vadd.f32 %v182, %v185
    %v192 = vadd.f32 %v182, %v189
    %v193 = vmax.f32 %v191, -1e+30
    %v194 = vmax.f32 %v192, -1e+30
    %v195 = vperm.slane %v152, 3
    %196 = vset.pattern.permute.xlu0 3
    %197 = vperm.xlu0 %196, %v146
    %v198 = vpop.permute.xlu0 %197
    %200 = vset.pattern.permute.xlu0 3
    %201 = vperm.xlu0 %200, %v147
    %v202 = vpop.permute.xlu0 %201
    %v204 = vadd.f32 %v195, %v198
    %v205 = vadd.f32 %v195, %v202
    %v206 = vmax.f32 %v204, -1e+30
    %v207 = vmax.f32 %v205, -1e+30
    %v208 = vperm.slane %v152, 4
    %209 = vset.pattern.permute.xlu0 4
    %210 = vperm.xlu0 %209, %v146
    %v211 = vpop.permute.xlu0 %210
    %213 = vset.pattern.permute.xlu0 4
    %214 = vperm.xlu0 %213, %v147
    %v215 = vpop.permute.xlu0 %214
    %v217 = vadd.f32 %v208, %v211
    %v218 = vadd.f32 %v208, %v215
    %v219 = vmax.f32 %v167, %v217
    %v220 = vmax.f32 %v168, %v218
    %v221 = vperm.slane %v152, 5
    %222 = vset.pattern.permute.xlu0 5
    %223 = vperm.xlu0 %222, %v146
    %v224 = vpop.permute.xlu0 %223
    %226 = vset.pattern.permute.xlu0 5
    %227 = vperm.xlu0 %226, %v147
    %v228 = vpop.permute.xlu0 %227
    %v230 = vadd.f32 %v221, %v224
    %v231 = vadd.f32 %v221, %v228
    %v232 = vmax.f32 %v180, %v230
    %v233 = vmax.f32 %v181, %v231
    %v234 = vperm.slane %v152, 6
    %235 = vset.pattern.permute.xlu0 6
    %236 = vperm.xlu0 %235, %v146
    %v237 = vpop.permute.xlu0 %236
    %239 = vset.pattern.permute.xlu0 6
    %240 = vperm.xlu0 %239, %v147
    %v241 = vpop.permute.xlu0 %240
    %v243 = vadd.f32 %v234, %v237
    %v244 = vadd.f32 %v234, %v241
    %v245 = vmax.f32 %v193, %v243
    %v246 = vmax.f32 %v194, %v244
    %v247 = vperm.slane %v152, 7
    %248 = vset.pattern.permute.xlu0 7
    %249 = vperm.xlu0 %248, %v146
    %v250 = vpop.permute.xlu0 %249
    %252 = vset.pattern.permute.xlu0 7
    %253 = vperm.xlu0 %252, %v147
    %v254 = vpop.permute.xlu0 %253
    %v256 = vadd.f32 %v247, %v250
    %v257 = vadd.f32 %v247, %v254
    %v258 = vmax.f32 %v206, %v256
    %v259 = vmax.f32 %v207, %v257
    %v260 = vperm.slane %v153, 0
    %261 = vset.pattern.permute.xlu0 8
    %262 = vperm.xlu0 %261, %v146
    %v263 = vpop.permute.xlu0 %262
    %265 = vset.pattern.permute.xlu0 8
    %266 = vperm.xlu0 %265, %v147
    %v267 = vpop.permute.xlu0 %266
    %v269 = vadd.f32 %v260, %v263
    %v270 = vadd.f32 %v260, %v267
    %v271 = vmax.f32 %v219, %v269
    %v272 = vmax.f32 %v220, %v270
    %v273 = vperm.slane %v153, 1
    %274 = vset.pattern.permute.xlu0 9
    %275 = vperm.xlu0 %274, %v146
    %v276 = vpop.permute.xlu0 %275
    %278 = vset.pattern.permute.xlu0 9
    %279 = vperm.xlu0 %278, %v147
    %v280 = vpop.permute.xlu0 %279
    %v282 = vadd.f32 %v273, %v276
    %v283 = vadd.f32 %v273, %v280
    %v284 = vmax.f32 %v232, %v282
    %v285 = vmax.f32 %v233, %v283
    %v286 = vperm.slane %v153, 2
    %287 = vset.pattern.permute.xlu0 10
    %288 = vperm.xlu0 %287, %v146
    %v289 = vpop.permute.xlu0 %288
    %291 = vset.pattern.permute.xlu0 10
    %292 = vperm.xlu0 %291, %v147
    %v293 = vpop.permute.xlu0 %292
    %v295 = vadd.f32 %v286, %v289
    %v296 = vadd.f32 %v286, %v293
    %v297 = vmax.f32 %v245, %v295
    %v298 = vmax.f32 %v246, %v296
    %v299 = vperm.slane %v153, 3
    %300 = vset.pattern.permute.xlu0 11
    %301 = vperm.xlu0 %300, %v146
    %v302 = vpop.permute.xlu0 %301
    %304 = vset.pattern.permute.xlu0 11
    %305 = vperm.xlu0 %304, %v147
    %v306 = vpop.permute.xlu0 %305
    %v308 = vadd.f32 %v299, %v302
    %v309 = vadd.f32 %v299, %v306
    %v310 = vmax.f32 %v258, %v308
    %v311 = vmax.f32 %v259, %v309
    %v312 = vperm.slane %v153, 4
    %313 = vset.pattern.permute.xlu0 12
    %314 = vperm.xlu0 %313, %v146
    %v315 = vpop.permute.xlu0 %314
    %317 = vset.pattern.permute.xlu0 12
    %318 = vperm.xlu0 %317, %v147
    %v319 = vpop.permute.xlu0 %318
    %v321 = vadd.f32 %v312, %v315
    %v322 = vadd.f32 %v312, %v319
    %v323 = vmax.f32 %v271, %v321
    %v324 = vmax.f32 %v272, %v322
    %v325 = vperm.slane %v153, 5
    %326 = vset.pattern.permute.xlu0 13
    %327 = vperm.xlu0 %326, %v146
    %v328 = vpop.permute.xlu0 %327
    %330 = vset.pattern.permute.xlu0 13
    %331 = vperm.xlu0 %330, %v147
    %v332 = vpop.permute.xlu0 %331
    %v334 = vadd.f32 %v325, %v328
    %v335 = vadd.f32 %v325, %v332
    %v336 = vmax.f32 %v284, %v334
    %v337 = vmax.f32 %v285, %v335
    %v338 = vperm.slane %v153, 6
    %339 = vset.pattern.permute.xlu0 14
    %340 = vperm.xlu0 %339, %v146
    %v341 = vpop.permute.xlu0 %340
    %343 = vset.pattern.permute.xlu0 14
    %344 = vperm.xlu0 %343, %v147
    %v345 = vpop.permute.xlu0 %344
    %v347 = vadd.f32 %v338, %v341
    %v348 = vadd.f32 %v338, %v345
    %v349 = vmax.f32 %v297, %v347
    %v350 = vmax.f32 %v298, %v348
    %v351 = vperm.slane %v153, 7
    %352 = vset.pattern.permute.xlu0 15
    %353 = vperm.xlu0 %352, %v146
    %v354 = vpop.permute.xlu0 %353
    %356 = vset.pattern.permute.xlu0 15
    %357 = vperm.xlu0 %356, %v147
    %v358 = vpop.permute.xlu0 %357
    %v360 = vadd.f32 %v351, %v354
    %v361 = vadd.f32 %v351, %v358
    %v362 = vmax.f32 %v310, %v360
    %v363 = vmax.f32 %v311, %v361
    %v364 = vld [vmem:[#allocation7 + $0x8] sm:$0xf]
    %v365 = vld [vmem:[#allocation7 + $0xc] sm:$0xf]
    %v366 = vunpack.c.l.bf16 %v364
    %v367 = vunpack.c.l.bf16 %v365
    %v368 = vperm.slane %v366, 0
    %369 = vset.pattern.permute.xlu0 16
    %370 = vperm.xlu0 %369, %v146
    %v371 = vpop.permute.xlu0 %370
    %373 = vset.pattern.permute.xlu0 16
    %374 = vperm.xlu0 %373, %v147
    %v375 = vpop.permute.xlu0 %374
    %v377 = vadd.f32 %v368, %v371
    %v378 = vadd.f32 %v368, %v375
    %v379 = vmax.f32 %v323, %v377
    %v380 = vmax.f32 %v324, %v378
    %v381 = vperm.slane %v366, 1
    %382 = vset.pattern.permute.xlu0 17
    %383 = vperm.xlu0 %382, %v146
    %v384 = vpop.permute.xlu0 %383
    %386 = vset.pattern.permute.xlu0 17
    %387 = vperm.xlu0 %386, %v147
    %v388 = vpop.permute.xlu0 %387
    %v390 = vadd.f32 %v381, %v384
    %v391 = vadd.f32 %v381, %v388
    %v392 = vmax.f32 %v336, %v390
    %v393 = vmax.f32 %v337, %v391
    %v394 = vperm.slane %v366, 2
    %395 = vset.pattern.permute.xlu0 18
    %396 = vperm.xlu0 %395, %v146
    %v397 = vpop.permute.xlu0 %396
    %399 = vset.pattern.permute.xlu0 18
    %400 = vperm.xlu0 %399, %v147
    %v401 = vpop.permute.xlu0 %400
    %v403 = vadd.f32 %v394, %v397
    %v404 = vadd.f32 %v394, %v401
    %v405 = vmax.f32 %v349, %v403
    %v406 = vmax.f32 %v350, %v404
    %v407 = vperm.slane %v366, 3
    %408 = vset.pattern.permute.xlu0 19
    %409 = vperm.xlu0 %408, %v146
    %v410 = vpop.permute.xlu0 %409
    %412 = vset.pattern.permute.xlu0 19
    %413 = vperm.xlu0 %412, %v147
    %v414 = vpop.permute.xlu0 %413
    %v416 = vadd.f32 %v407, %v410
    %v417 = vadd.f32 %v407, %v414
    %v418 = vmax.f32 %v362, %v416
    %v419 = vmax.f32 %v363, %v417
    %v420 = vperm.slane %v366, 4
    %421 = vset.pattern.permute.xlu0 20
    %422 = vperm.xlu0 %421, %v146
    %v423 = vpop.permute.xlu0 %422
    %425 = vset.pattern.permute.xlu0 20
    %426 = vperm.xlu0 %425, %v147
    %v427 = vpop.permute.xlu0 %426
    %v429 = vadd.f32 %v420, %v423
    %v430 = vadd.f32 %v420, %v427
    %v431 = vmax.f32 %v379, %v429
    %v432 = vmax.f32 %v380, %v430
    %v433 = vperm.slane %v366, 5
    %434 = vset.pattern.permute.xlu0 21
    %435 = vperm.xlu0 %434, %v146
    %v436 = vpop.permute.xlu0 %435
    %438 = vset.pattern.permute.xlu0 21
    %439 = vperm.xlu0 %438, %v147
    %v440 = vpop.permute.xlu0 %439
    %v442 = vadd.f32 %v433, %v436
    %v443 = vadd.f32 %v433, %v440
    %v444 = vmax.f32 %v392, %v442
    %v445 = vmax.f32 %v393, %v443
    %v446 = vperm.slane %v366, 6
    %447 = vset.pattern.permute.xlu0 22
    %448 = vperm.xlu0 %447, %v146
    %v449 = vpop.permute.xlu0 %448
    %451 = vset.pattern.permute.xlu0 22
    %452 = vperm.xlu0 %451, %v147
    %v453 = vpop.permute.xlu0 %452
    %v455 = vadd.f32 %v446, %v449
    %v456 = vadd.f32 %v446, %v453
    %v457 = vmax.f32 %v405, %v455
    %v458 = vmax.f32 %v406, %v456
    %v459 = vperm.slane %v366, 7
    %460 = vset.pattern.permute.xlu0 23
    %461 = vperm.xlu0 %460, %v146
    %v462 = vpop.permute.xlu0 %461
    %464 = vset.pattern.permute.xlu0 23
    %465 = vperm.xlu0 %464, %v147
    %v466 = vpop.permute.xlu0 %465
    %v468 = vadd.f32 %v459, %v462
    %v469 = vadd.f32 %v459, %v466
    %v470 = vmax.f32 %v418, %v468
    %v471 = vmax.f32 %v419, %v469
    %v472 = vperm.slane %v367, 0
    %473 = vset.pattern.permute.xlu0 24
    %474 = vperm.xlu0 %473, %v146
    %v475 = vpop.permute.xlu0 %474
    %477 = vset.pattern.permute.xlu0 24
    %478 = vperm.xlu0 %477, %v147
    %v479 = vpop.permute.xlu0 %478
    %v481 = vadd.f32 %v472, %v475
    %v482 = vadd.f32 %v472, %v479
    %v483 = vmax.f32 %v431, %v481
    %v484 = vmax.f32 %v432, %v482
    %v485 = vperm.slane %v367, 1
    %486 = vset.pattern.permute.xlu0 25
    %487 = vperm.xlu0 %486, %v146
    %v488 = vpop.permute.xlu0 %487
    %490 = vset.pattern.permute.xlu0 25
    %491 = vperm.xlu0 %490, %v147
    %v492 = vpop.permute.xlu0 %491
    %v494 = vadd.f32 %v485, %v488
    %v495 = vadd.f32 %v485, %v492
    %v496 = vmax.f32 %v444, %v494
    %v497 = vmax.f32 %v445, %v495
    %v498 = vperm.slane %v367, 2
    %499 = vset.pattern.permute.xlu0 26
    %500 = vperm.xlu0 %499, %v146
    %v501 = vpop.permute.xlu0 %500
    %503 = vset.pattern.permute.xlu0 26
    %504 = vperm.xlu0 %503, %v147
    %v505 = vpop.permute.xlu0 %504
    %v507 = vadd.f32 %v498, %v501
    %v508 = vadd.f32 %v498, %v505
    %v509 = vmax.f32 %v457, %v507
    %v510 = vmax.f32 %v458, %v508
    %v511 = vperm.slane %v367, 3
    %512 = vset.pattern.permute.xlu0 27
    %513 = vperm.xlu0 %512, %v146
    %v514 = vpop.permute.xlu0 %513
    %516 = vset.pattern.permute.xlu0 27
    %517 = vperm.xlu0 %516, %v147
    %v518 = vpop.permute.xlu0 %517
    %v520 = vadd.f32 %v511, %v514
    %v521 = vadd.f32 %v511, %v518
    %v522 = vmax.f32 %v470, %v520
    %v523 = vmax.f32 %v471, %v521
    %v524 = vperm.slane %v367, 4
    %525 = vset.pattern.permute.xlu0 28
    %526 = vperm.xlu0 %525, %v146
    %v527 = vpop.permute.xlu0 %526
    %529 = vset.pattern.permute.xlu0 28
    %530 = vperm.xlu0 %529, %v147
    %v531 = vpop.permute.xlu0 %530
    %v533 = vadd.f32 %v524, %v527
    %v534 = vadd.f32 %v524, %v531
    %v535 = vmax.f32 %v483, %v533
    %v536 = vmax.f32 %v484, %v534
    %v537 = vperm.slane %v367, 5
    %538 = vset.pattern.permute.xlu0 29
    %539 = vperm.xlu0 %538, %v146
    %v540 = vpop.permute.xlu0 %539
    %542 = vset.pattern.permute.xlu0 29
    %543 = vperm.xlu0 %542, %v147
    %v544 = vpop.permute.xlu0 %543
    %v546 = vadd.f32 %v537, %v540
    %v547 = vadd.f32 %v537, %v544
    %v548 = vmax.f32 %v496, %v546
    %v549 = vmax.f32 %v497, %v547
    %v550 = vperm.slane %v367, 6
    %551 = vset.pattern.permute.xlu0 30
    %552 = vperm.xlu0 %551, %v146
    %v553 = vpop.permute.xlu0 %552
    %555 = vset.pattern.permute.xlu0 30
    %556 = vperm.xlu0 %555, %v147
    %v557 = vpop.permute.xlu0 %556
    %v559 = vadd.f32 %v550, %v553
    %v560 = vadd.f32 %v550, %v557
    %v561 = vmax.f32 %v509, %v559
    %v562 = vmax.f32 %v510, %v560
    %v563 = vperm.slane %v367, 7
    %564 = vset.pattern.permute.xlu0 31
    %565 = vperm.xlu0 %564, %v146
    %v566 = vpop.permute.xlu0 %565
    %568 = vset.pattern.permute.xlu0 31
    %569 = vperm.xlu0 %568, %v147
    %v570 = vpop.permute.xlu0 %569
    %v572 = vadd.f32 %v563, %v566
    %v573 = vadd.f32 %v563, %v570
    %v574 = vmax.f32 %v522, %v572
    %v575 = vmax.f32 %v523, %v573
    %v576 = vmax.f32 %v535, %v548
    %v577 = vmax.f32 %v536, %v549
    %v578 = vmax.f32 %v576, %v561
    %v579 = vmax.f32 %v577, %v562
    %v580 = vmax.f32 %v578, %v574
    %v581 = vmax.f32 %v579, %v575
    %582 = vst [vmem:[#allocation3] sm:$0xff] %v580
    %583 = vst [vmem:[#allocation3 + $0x8] sm:$0xff] %v581
    // Predicated region
    $region42: #{tpu_custom_call.1} parent=1 // pred_check
      %p584 = pneg %p85
    $region43: #{tpu_custom_call.1} parent=1 // pred_check_branch
      %586 = sbr.rel (%p584) target = $region45
    $region44: #{tpu_custom_call.1} parent=1 // pred_region
      %v587 = vld [vmem:[#allocation2] sm:$0xff]
      %v588 = vld [vmem:[#allocation2 + $0x8] sm:$0xff]
      %v589 = vmax.f32 %v587, 1.0
      %v590 = vmax.f32 %v588, 1.0
      %v591 = vrcp.pop %v589
      %v592 = vrcp.pop %v590
      %594 = vset.pattern.permute.xlu0 8
      %595 = vperm.xlu0 %594, %v591
      %v596 = vpop.permute.xlu0 %595
      %599 = vset.pattern.permute.xlu0 8
      %600 = vperm.xlu0 %599, %v592
      %v601 = vpop.permute.xlu0 %600
      %v603 = vmul.f32 %v587, %v596
      %v604 = vmul.f32 %v588, %v601
      %v605 = vpack.c.bf16 %v604, %v603
      %vm606 = vcmp.gt.f32.partialorder %v587, 0.0
      %vm607 = vcmp.gt.f32.partialorder %v588, 0.0
      %v608 = vld [vmem:[#allocation3] sm:$0xff]
      %v609 = vld [vmem:[#allocation3 + $0x8] sm:$0xff]
      %v610 = vsel %vm606, 1, 0
      %v611 = vsel %vm607, 1, 0
      %612 = vset.pattern.permute.xlu0 8
      %613 = vperm.xlu0 %612, %v610
      %v614 = vpop.permute.xlu0 %613
      %615 = vset.pattern.permute.xlu0 8
      %616 = vperm.xlu0 %615, %v611
      %v617 = vpop.permute.xlu0 %616
      %vm618 = vcmp.eq.s32.totalorder %v614, 1
      %vm619 = vcmp.eq.s32.totalorder %v617, 1
      %v620 = vsel %vm618, %v608, 0.0
      %v621 = vsel %vm619, %v609, 0.0
      %v622 = vpack.c.bf16 %v621, %v620
      %v623 = vld [vmem:[#allocation10] sm:$0xf]
      %v624 = vld [vmem:[#allocation10 + $0x4] sm:$0xf]
      %v625 = vld [vmem:[#allocation10 + $0x8] sm:$0xf]
      %v626 = vld [vmem:[#allocation10 + $0xc] sm:$0xf]
      %v627 = vld [vmem:[#allocation10 + $0x10] sm:$0xf]
      %v628 = vld [vmem:[#allocation10 + $0x14] sm:$0xf]
      %v629 = vld [vmem:[#allocation10 + $0x18] sm:$0xf]
      %v630 = vld [vmem:[#allocation10 + $0x1c] sm:$0xf]
      %v631 = vld [vmem:[#allocation10 + $0x20] sm:$0xf]
      %v632 = vld [vmem:[#allocation10 + $0x24] sm:$0xf]
      %v633 = vld [vmem:[#allocation10 + $0x28] sm:$0xf]
      %v634 = vld [vmem:[#allocation10 + $0x2c] sm:$0xf]
      %v635 = vld [vmem:[#allocation10 + $0x30] sm:$0xf]
      %v636 = vld [vmem:[#allocation10 + $0x34] sm:$0xf]
      %v637 = vld [vmem:[#allocation10 + $0x38] sm:$0xf]
      %v638 = vld [vmem:[#allocation10 + $0x3c] sm:$0xf]
      %s639 = scalar_lea.vmem [#allocation10], 64
      %v640 = vld [vmem:[%s639] sm:$0xf]
      %v641 = vld [vmem:[%s639 + $0x4] sm:$0xf]
      %v642 = vld [vmem:[%s639 + $0x8] sm:$0xf]
      %v643 = vld [vmem:[%s639 + $0xc] sm:$0xf]
      %v644 = vld [vmem:[%s639 + $0x10] sm:$0xf]
      %v645 = vld [vmem:[%s639 + $0x14] sm:$0xf]
      %v646 = vld [vmem:[%s639 + $0x18] sm:$0xf]
      %v647 = vld [vmem:[%s639 + $0x1c] sm:$0xf]
      %v648 = vld [vmem:[%s639 + $0x20] sm:$0xf]
      %v649 = vld [vmem:[%s639 + $0x24] sm:$0xf]
      %v650 = vld [vmem:[%s639 + $0x28] sm:$0xf]
      %v651 = vld [vmem:[%s639 + $0x2c] sm:$0xf]
      %v652 = vld [vmem:[%s639 + $0x30] sm:$0xf]
      %v653 = vld [vmem:[%s639 + $0x34] sm:$0xf]
      %v654 = vld [vmem:[%s639 + $0x38] sm:$0xf]
      %v655 = vld [vmem:[%s639 + $0x3c] sm:$0xf]
      %v672 = vunpack.c.l.b16 %v640
      %v673 = vunpack.c.l.b16 %v641
      %v674 = vunpack.c.l.b16 %v642
      %v675 = vunpack.c.l.b16 %v643
      %v676 = vunpack.c.l.b16 %v644
      %v677 = vunpack.c.l.b16 %v645
      %v678 = vunpack.c.l.b16 %v646
      %v679 = vunpack.c.l.b16 %v647
      %v680 = vunpack.c.l.b16 %v648
      %v681 = vunpack.c.l.b16 %v649
      %v682 = vunpack.c.l.b16 %v650
      %v683 = vunpack.c.l.b16 %v651
      %v684 = vunpack.c.l.b16 %v652
      %v685 = vunpack.c.l.b16 %v653
      %v686 = vunpack.c.l.b16 %v654
      %v687 = vunpack.c.l.b16 %v655
      %v688 = vpack.c.b16 %v673, %v672
      %v689 = vpack.c.b16 %v675, %v674
      %v690 = vpack.c.b16 %v677, %v676
      %v691 = vpack.c.b16 %v679, %v678
      %v692 = vpack.c.b16 %v681, %v680
      %v693 = vpack.c.b16 %v683, %v682
      %v694 = vpack.c.b16 %v685, %v684
      %v695 = vpack.c.b16 %v687, %v686
      %704 = vmatpush.bf16.msra.mxu0 %v695
      %705 = vmatpush.bf16.msra.mxu0 %v694
      %706 = vmatpush.bf16.msra.mxu0 %v693
      %707 = vmatpush.bf16.msra.mxu0 %v692
      %708 = vmatpush.bf16.msra.mxu0 %v691
      %709 = vmatpush.bf16.msra.mxu0 %v690
      %710 = vmatpush.bf16.msra.mxu0 %v689
      %711 = vmatpush.bf16.msra.mxu0 %v688
      %712 = vmatmul.bf16.gmra.mxu0 %v622
      %v713 = vpop.f32.mrf.mxu0
      %v714 = vadd.f32 0.0, %v713
      %v715 = vpop.f32.mrf.mxu0
      %v716 = vadd.f32 0.0, %v715
      %717 = vdwg.mxu0
      %v734 = vunpack.c.l.b16 %v623
      %v735 = vunpack.c.l.b16 %v624
      %v736 = vunpack.c.l.b16 %v625
      %v737 = vunpack.c.l.b16 %v626
      %v738 = vunpack.c.l.b16 %v627
      %v739 = vunpack.c.l.b16 %v628
      %v740 = vunpack.c.l.b16 %v629
      %v741 = vunpack.c.l.b16 %v630
      %v742 = vunpack.c.l.b16 %v631
      %v743 = vunpack.c.l.b16 %v632
      %v744 = vunpack.c.l.b16 %v633
      %v745 = vunpack.c.l.b16 %v634
      %v746 = vunpack.c.l.b16 %v635
      %v747 = vunpack.c.l.b16 %v636
      %v748 = vunpack.c.l.b16 %v637
      %v749 = vunpack.c.l.b16 %v638
      %v750 = vpack.c.b16 %v735, %v734
      %v751 = vpack.c.b16 %v737, %v736
      %v752 = vpack.c.b16 %v739, %v738
      %v753 = vpack.c.b16 %v741, %v740
      %v754 = vpack.c.b16 %v743, %v742
      %v755 = vpack.c.b16 %v745, %v744
      %v756 = vpack.c.b16 %v747, %v746
      %v757 = vpack.c.b16 %v749, %v748
      %766 = vmatpush.bf16.msra.mxu0 %v757
      %767 = vmatpush.bf16.msra.mxu0 %v756
      %768 = vmatpush.bf16.msra.mxu0 %v755
      %769 = vmatpush.bf16.msra.mxu0 %v754
      %770 = vmatpush.bf16.msra.mxu0 %v753
      %771 = vmatpush.bf16.msra.mxu0 %v752
      %772 = vmatpush.bf16.msra.mxu0 %v751
      %773 = vmatpush.bf16.msra.mxu0 %v750
      %774 = vmatmul.bf16.gmra.mxu0 %v605
      %v775 = vpop.f32.mrf.mxu0
      %v776 = vadd.f32 %v714, %v775
      %v777 = vpop.f32.mrf.mxu0
      %v778 = vadd.f32 %v716, %v777
      %779 = vdwg.mxu0
      %v780 = vld [vmem:[#allocation9] sm:$0xf]
      %v781 = vld [vmem:[#allocation9 + $0x4] sm:$0xf]
      %s782 = scalar_lea.vmem [#allocation10], 128
      %v783 = vld [vmem:[%s782] sm:$0xf]
      %v784 = vld [vmem:[%s782 + $0x4] sm:$0xf]
      %v785 = vld [vmem:[%s782 + $0x8] sm:$0xf]
      %v786 = vld [vmem:[%s782 + $0xc] sm:$0xf]
      %v787 = vld [vmem:[%s782 + $0x10] sm:$0xf]
      %v788 = vld [vmem:[%s782 + $0x14] sm:$0xf]
      %v789 = vld [vmem:[%s782 + $0x18] sm:$0xf]
      %v790 = vld [vmem:[%s782 + $0x1c] sm:$0xf]
      %v791 = vld [vmem:[%s782 + $0x20] sm:$0xf]
      %v792 = vld [vmem:[%s782 + $0x24] sm:$0xf]
      %v793 = vld [vmem:[%s782 + $0x28] sm:$0xf]
      %v794 = vld [vmem:[%s782 + $0x2c] sm:$0xf]
      %v795 = vld [vmem:[%s782 + $0x30] sm:$0xf]
      %v796 = vld [vmem:[%s782 + $0x34] sm:$0xf]
      %v797 = vld [vmem:[%s782 + $0x38] sm:$0xf]
      %v798 = vld [vmem:[%s782 + $0x3c] sm:$0xf]
      %v801 = vunpack.c.l.b16 %v780
      %v802 = vunpack.c.l.b16 %v781
      %v803 = vpack.c.b16 %v802, %v801
      %v821 = vunpack.c.l.b16 %v783
      %v822 = vunpack.c.l.b16 %v784
      %v823 = vunpack.c.l.b16 %v785
      %v824 = vunpack.c.l.b16 %v786
      %v825 = vunpack.c.l.b16 %v787
      %v826 = vunpack.c.l.b16 %v788
      %v827 = vunpack.c.l.b16 %v789
      %v828 = vunpack.c.l.b16 %v790
      %v829 = vunpack.c.l.b16 %v791
      %v830 = vunpack.c.l.b16 %v792
      %v831 = vunpack.c.l.b16 %v793
      %v832 = vunpack.c.l.b16 %v794
      %v833 = vunpack.c.l.b16 %v795
      %v834 = vunpack.c.l.b16 %v796
      %v835 = vunpack.c.l.b16 %v797
      %v836 = vunpack.c.l.b16 %v798
      %v837 = vpack.c.b16 %v822, %v821
      %v838 = vpack.c.b16 %v824, %v823
      %v839 = vpack.c.b16 %v826, %v825
      %v840 = vpack.c.b16 %v828, %v827
      %v841 = vpack.c.b16 %v830, %v829
      %v842 = vpack.c.b16 %v832, %v831
      %v843 = vpack.c.b16 %v834, %v833
      %v844 = vpack.c.b16 %v836, %v835
      %853 = vmatpush.bf16.msra.mxu0 %v844
      %854 = vmatpush.bf16.msra.mxu0 %v843
      %855 = vmatpush.bf16.msra.mxu0 %v842
      %856 = vmatpush.bf16.msra.mxu0 %v841
      %857 = vmatpush.bf16.msra.mxu0 %v840
      %858 = vmatpush.bf16.msra.mxu0 %v839
      %859 = vmatpush.bf16.msra.mxu0 %v838
      %860 = vmatpush.bf16.msra.mxu0 %v837
      %861 = vmatmul.bf16.gmra.mxu0 %v803
      %v862 = vpop.f32.mrf.mxu0
      %v863 = vadd.f32 0.0, %v862
      %v864 = vpop.f32.mrf.mxu0
      %v865 = vadd.f32 0.0, %v864
      %866 = vdwg.mxu0
      %v867 = vadd.f32 %v776, %v863
      %v868 = vadd.f32 %v778, %v865
      %v869 = vld [vmem:[%s4] sm:$0x1]
      %v871 = vperm.slane %v869, 0
      %v873 = vadd.f32 %v867, %v871
      %v874 = vadd.f32 %v868, %v871
      %v875 = vmax.f32 %v873, 0.0
      %v876 = vmax.f32 %v874, 0.0
      %877 = vst [vmem:[#allocation12] sm:$0xff] %v875
      %878 = vst [vmem:[#allocation12 + $0x8] sm:$0xff] %v876
    $region45: #{tpu_custom_call.1} parent=1 // pred_fallthru
      _
    // Predicated region
    $region46: #{tpu_custom_call.1} parent=1 // pred_check
      _
    $region47: #{tpu_custom_call.1} parent=1 // pred_check_branch
      %880 = sbr.rel (0) target = $region49
    $region48: #{tpu_custom_call.1} parent=1 // pred_region
      %882 = vsyncadd [#allocation6], 0
      %s883 = sshll.u32 [#allocation12], 4
      %s884 = int_to_ptr.vmem [resolvable:$true] %s883
      %s885 = sshll.u32 %s5, 4
      %s886 = int_to_ptr.hbm [resolvable:$true] %s885
      %891 = dma.vmem_to_hbm [thread:$0]  %s884, 256, %s886, [#allocation6], 128, 128, 8
    $region49: #{tpu_custom_call.1} parent=1 // pred_fallthru
      _
    // Predicated region
    $region50: #{tpu_custom_call.1} parent=1 // pred_check
      _
    $region51: #{tpu_custom_call.1} parent=1 // pred_check_branch
      %893 = sbr.rel (0) target = $region53
    $region52: #{tpu_custom_call.1} parent=1 // pred_region
      %895 = dma.done [#allocation6], 256
    $region53: #{tpu_custom_call.1} parent=1 // pred_fallthru
      _
    %896 = vsyncpa [#allocation5], 1
    %897 = vsyncpa [#allocation8], 1
    %898 = vsyncpa [#allocation11], 1
    %899 = vsyncpa [#allocation6], 1

</llo_original>
